<compile_context>
chip_gen: v5e
topology: v5e:2x2
jax: 0.10.0
libtpu: 0.0.40
codegen_flags: <defaults>
</compile_context>

<pallas_src>
import functools

import jax
import jax.numpy as jnp
from jax.experimental import pallas as pl
from jax.experimental.pallas import tpu as pltpu


LANE = 128   # lane width / hidden width of the MLP
SUBLANE = 8  # sublane granularity (f32)


def _round_up(n, m):
    return ((n + m - 1) // m) * m


def _pose_encoder_kernel(x_ref, w1_ref, b1_ref, w2_ref, b2_ref,
                         w3_ref, b3_ref, w4_ref, b4_ref, o_ref):
    """One batch tile: 4 x (MXU matmul, f32 accumulate) + f32 bias/ReLU."""
    cdt = w1_ref.dtype  # compute dtype of the MXU operands (bf16 by default)

    # Layer 1: Linear(128(padded from 72), 128) + ReLU  (Dropout = identity)
    h = jnp.dot(x_ref[...], w1_ref[...], preferred_element_type=jnp.float32)
    h = jnp.maximum(h + b1_ref[...], 0.0)
    # Layer 2: Linear(128, 128) + ReLU
    h = jnp.dot(h.astype(cdt), w2_ref[...], preferred_element_type=jnp.float32)
    h = jnp.maximum(h + b2_ref[...], 0.0)
    # Layer 3: Linear(128, 128) + ReLU
    h = jnp.dot(h.astype(cdt), w3_ref[...], preferred_element_type=jnp.float32)
    h = jnp.maximum(h + b3_ref[...], 0.0)
    # Layer 4: Linear(128, out_features) — lane-sparse N but MXU has slack here.
    out = jnp.dot(h.astype(cdt), w4_ref[...],
                  preferred_element_type=jnp.float32) + b4_ref[...]
    o_ref[...] = out.astype(o_ref.dtype)


def prepare_params(params, compute_dtype=jnp.bfloat16):
    """Pad w1 to K=128 (lane-dense) and pre-cast weights to the MXU dtype."""
    w1 = params["w1"]
    in_features = w1.shape[0]
    k_pad = _round_up(max(in_features, 1), LANE)
    w1p = jnp.zeros((k_pad, w1.shape[1]), w1.dtype).at[:in_features, :].set(w1)
    prepped = {
        "w1": w1p.astype(compute_dtype),
        "w2": params["w2"].astype(compute_dtype),
        "w3": params["w3"].astype(compute_dtype),
        "w4": params["w4"].astype(compute_dtype),
        # biases stay f32 (added to the f32 accumulator)
        "b1": params["b1"].astype(jnp.float32),
        "b2": params["b2"].astype(jnp.float32),
        "b3": params["b3"].astype(jnp.float32),
        "b4": params["b4"].astype(jnp.float32),
    }
    return prepped, in_features, k_pad


@functools.partial(jax.jit, static_argnames=("tile_b", "compute_dtype"))
def pose_encoder_forward(x, params, *, tile_b=512, compute_dtype=jnp.bfloat16):
    """x: (B, in_features) float32. params: dict of f32 weights/biases.

    Returns {'pose_corr': (B, out_features)} matching the PyTorch forward
    (eval mode: Dropout is identity).
    """
    p, in_features, k_pad = prepare_params(params, compute_dtype)
    w1, b1 = p["w1"], p["b1"]
    w2, b2 = p["w2"], p["b2"]
    w3, b3 = p["w3"], p["b3"]
    w4, b4 = p["w4"], p["b4"]
    out_features = w4.shape[1]

    B = x.shape[0]
    # Batch tile: multiple of 8 (sublane), capped at tile_b; pad B up to a
    # whole number of tiles. (Padded rows are computed and then sliced off.)
    tb = min(tile_b, _round_up(max(B, 1), SUBLANE))
    b_pad = _round_up(max(B, 1), tb)

    # Lane-dense, batch-padded input in the MXU compute dtype.
    x_p = jnp.zeros((b_pad, k_pad), compute_dtype)
    x_p = x_p.at[:B, :in_features].set(x.astype(compute_dtype))

    grid = (b_pad // tb,)
    whole = lambda a: pl.BlockSpec(a.shape, lambda i, _n=a.ndim: (0,) * _n)

    out_padded = pl.pallas_call(
        _pose_encoder_kernel,
        out_shape=jax.ShapeDtypeStruct((b_pad, out_features), jnp.float32),
        grid=grid,
        in_specs=[
            pl.BlockSpec((tb, k_pad), lambda i: (i, 0)),   # x tile (pipelined)
            whole(w1), whole(b1),                          # weights resident
            whole(w2), whole(b2),
            whole(w3), whole(b3),
            whole(w4), whole(b4),
        ],
        out_specs=pl.BlockSpec((tb, out_features), lambda i: (i, 0)),
        compiler_params=pltpu.CompilerParams(
            dimension_semantics=("parallel",),   # megacore sharding on v7x
            vmem_limit_bytes=64 << 20,
        ),
    )(x_p, w1, b1, w2, b2, w3, b3, w4, b4)

    return {"pose_corr": out_padded[:B].astype(x.dtype)}


def init_params(key, in_features=72, hidden=128, out_features=1,
                dtype=jnp.float32):
    """Deterministic synthetic parameters (uniform, PyTorch-Linear-like scale)."""
    ks = jax.random.split(key, 8)

    def lin(kw, kb, fan_in, fan_out):
        bound = 1.0 / jnp.sqrt(fan_in)
        w = jax.random.uniform(kw, (fan_in, fan_out), dtype,
                               minval=-bound, maxval=bound)
        b = jax.random.uniform(kb, (1, fan_out), dtype,
                               minval=-bound, maxval=bound)
        return w, b

    w1, b1 = lin(ks[0], ks[1], in_features, hidden)
    w2, b2 = lin(ks[2], ks[3], hidden, hidden)
    w3, b3 = lin(ks[4], ks[5], hidden, hidden)
    w4, b4 = lin(ks[6], ks[7], hidden, out_features)
    return {"w1": w1, "b1": b1, "w2": w2, "b2": b2,
            "w3": w3, "b3": b3, "w4": w4, "b4": b4}


def _reference(x, params, compute_dtype=jnp.bfloat16):
    """Plain-JAX reference with the same mixed precision (bf16 ops, f32 acc)."""
    cdt = compute_dtype

    def lin(h, w, b):
        return jnp.dot(h.astype(cdt), w.astype(cdt),
                       preferred_element_type=jnp.float32) + b

    h = jnp.maximum(lin(x, params["w1"], params["b1"]), 0.0)
    h = jnp.maximum(lin(h, params["w2"], params["b2"]), 0.0)
    h = jnp.maximum(lin(h, params["w3"], params["b3"]), 0.0)
    return lin(h, params["w4"], params["b4"])


if __name__ == "__main__":
    key = jax.random.PRNGKey(0)
    k_params, k_x = jax.random.split(key)

    B, IN_FEATURES, OUT_FEATURES = 8, 72, 1
    params = init_params(k_params, IN_FEATURES, 128, OUT_FEATURES)
    x = jax.random.normal(k_x, (B, IN_FEATURES), dtype=jnp.float32)

    out = pose_encoder_forward(x, params)
    feat = jax.block_until_ready(out["pose_corr"])
    assert feat.shape == (B, OUT_FEATURES)

    # Mixed-precision (bf16 operands, f32 accumulate) reference.
    ref_mixed = _reference(x, params)
    assert jnp.allclose(feat, ref_mixed, atol=1e-2, rtol=1e-2)

    # Full-f32 reference (eval-mode: dropout = identity) — looser tolerance
    # because the kernel uses bf16 MXU operands.
    h = jnp.maximum(x @ params["w1"] + params["b1"], 0.0)
    h = jnp.maximum(h @ params["w2"] + params["b2"], 0.0)
    h = jnp.maximum(h @ params["w3"] + params["b3"], 0.0)
    ref_f32 = h @ params["w4"] + params["b4"]
    assert jnp.allclose(feat, ref_f32, atol=5e-2, rtol=5e-2)

    print("KERNEL_OK")
</pallas_src>

<mosaic_0001>
module attributes {stable_mosaic.version = 11 : i64} {
  func.func @_pose_encoder_kernel(%arg0: i32, %arg1: memref<8x128xbf16, #tpu.memory_space<vmem>>, %arg2: memref<128x128xbf16, #tpu.memory_space<vmem>>, %arg3: memref<1x128xf32, #tpu.memory_space<vmem>>, %arg4: memref<128x128xbf16, #tpu.memory_space<vmem>>, %arg5: memref<1x128xf32, #tpu.memory_space<vmem>>, %arg6: memref<128x128xbf16, #tpu.memory_space<vmem>>, %arg7: memref<1x128xf32, #tpu.memory_space<vmem>>, %arg8: memref<128x1xbf16, #tpu.memory_space<vmem>>, %arg9: memref<1x1xf32, #tpu.memory_space<vmem>>, %arg10: memref<8x1xf32, #tpu.memory_space<vmem>>) attributes {dimension_semantics = [#tpu.dimension_semantics<parallel>], iteration_bounds = array<i64: 1>, scalar_prefetch = 0 : i64, scratch_operands = 0 : i64, tpu.core_type = #tpu.core_type<tc>, window_params = [{transform_indices = @transform_0, window_bounds = array<i64: 8, 128>}, {pipeline_mode = #tpu.pipeline_mode<synchronous>, transform_indices = @transform_1, window_bounds = array<i64: 128, 128>}, {pipeline_mode = #tpu.pipeline_mode<synchronous>, transform_indices = @transform_2, window_bounds = array<i64: 1, 128>}, {pipeline_mode = #tpu.pipeline_mode<synchronous>, transform_indices = @transform_3, window_bounds = array<i64: 128, 128>}, {pipeline_mode = #tpu.pipeline_mode<synchronous>, transform_indices = @transform_4, window_bounds = array<i64: 1, 128>}, {pipeline_mode = #tpu.pipeline_mode<synchronous>, transform_indices = @transform_5, window_bounds = array<i64: 128, 128>}, {pipeline_mode = #tpu.pipeline_mode<synchronous>, transform_indices = @transform_6, window_bounds = array<i64: 1, 128>}, {pipeline_mode = #tpu.pipeline_mode<synchronous>, transform_indices = @transform_7, window_bounds = array<i64: 128, 1>}, {pipeline_mode = #tpu.pipeline_mode<synchronous>, transform_indices = @transform_8, window_bounds = array<i64: 1, 1>}, {transform_indices = @transform_9, window_bounds = array<i64: 8, 1>}]} {
    %c0 = arith.constant 0 : index
    %c0_0 = arith.constant 0 : index
    %0 = vector.load %arg1[%c0, %c0_0] : memref<8x128xbf16, #tpu.memory_space<vmem>>, vector<8x128xbf16>
    %c0_1 = arith.constant 0 : index
    %c0_2 = arith.constant 0 : index
    %1 = vector.load %arg2[%c0_1, %c0_2] : memref<128x128xbf16, #tpu.memory_space<vmem>>, vector<128x128xbf16>
    %cst = arith.constant dense<0.000000e+00> : vector<8x128xf32>
    %2 = tpu.matmul %0, %1, %cst {dimension_numbers = #tpu.dot_dimension_numbers<[1], [0], [0], [1], [0, 0, 1, 1], [], []>} : vector<8x128xbf16>, vector<128x128xbf16>, vector<8x128xf32> -> vector<8x128xf32>
    %c0_3 = arith.constant 0 : index
    %c0_4 = arith.constant 0 : index
    %3 = vector.load %arg3[%c0_3, %c0_4] : memref<1x128xf32, #tpu.memory_space<vmem>>, vector<1x128xf32>
    %4 = vector.broadcast %3 : vector<1x128xf32> to vector<8x128xf32>
    %5 = arith.addf %2, %4 : vector<8x128xf32>
    %cst_5 = arith.constant 0.000000e+00 : f32
    %6 = vector.broadcast %cst_5 : f32 to vector<8x128xf32>
    %7 = arith.maximumf %5, %6 : vector<8x128xf32>
    %8 = arith.truncf %7 : vector<8x128xf32> to vector<8x128xbf16>
    %c0_6 = arith.constant 0 : index
    %c0_7 = arith.constant 0 : index
    %9 = vector.load %arg4[%c0_6, %c0_7] : memref<128x128xbf16, #tpu.memory_space<vmem>>, vector<128x128xbf16>
    %cst_8 = arith.constant dense<0.000000e+00> : vector<8x128xf32>
    %10 = tpu.matmul %8, %9, %cst_8 {dimension_numbers = #tpu.dot_dimension_numbers<[1], [0], [0], [1], [0, 0, 1, 1], [], []>} : vector<8x128xbf16>, vector<128x128xbf16>, vector<8x128xf32> -> vector<8x128xf32>
    %c0_9 = arith.constant 0 : index
    %c0_10 = arith.constant 0 : index
    %11 = vector.load %arg5[%c0_9, %c0_10] : memref<1x128xf32, #tpu.memory_space<vmem>>, vector<1x128xf32>
    %12 = vector.broadcast %11 : vector<1x128xf32> to vector<8x128xf32>
    %13 = arith.addf %10, %12 : vector<8x128xf32>
    %cst_11 = arith.constant 0.000000e+00 : f32
    %14 = vector.broadcast %cst_11 : f32 to vector<8x128xf32>
    %15 = arith.maximumf %13, %14 : vector<8x128xf32>
    %16 = arith.truncf %15 : vector<8x128xf32> to vector<8x128xbf16>
    %c0_12 = arith.constant 0 : index
    %c0_13 = arith.constant 0 : index
    %17 = vector.load %arg6[%c0_12, %c0_13] : memref<128x128xbf16, #tpu.memory_space<vmem>>, vector<128x128xbf16>
    %cst_14 = arith.constant dense<0.000000e+00> : vector<8x128xf32>
    %18 = tpu.matmul %16, %17, %cst_14 {dimension_numbers = #tpu.dot_dimension_numbers<[1], [0], [0], [1], [0, 0, 1, 1], [], []>} : vector<8x128xbf16>, vector<128x128xbf16>, vector<8x128xf32> -> vector<8x128xf32>
    %c0_15 = arith.constant 0 : index
    %c0_16 = arith.constant 0 : index
    %19 = vector.load %arg7[%c0_15, %c0_16] : memref<1x128xf32, #tpu.memory_space<vmem>>, vector<1x128xf32>
    %20 = vector.broadcast %19 : vector<1x128xf32> to vector<8x128xf32>
    %21 = arith.addf %18, %20 : vector<8x128xf32>
    %cst_17 = arith.constant 0.000000e+00 : f32
    %22 = vector.broadcast %cst_17 : f32 to vector<8x128xf32>
    %23 = arith.maximumf %21, %22 : vector<8x128xf32>
    %24 = arith.truncf %23 : vector<8x128xf32> to vector<8x128xbf16>
    %c0_18 = arith.constant 0 : index
    %c0_19 = arith.constant 0 : index
    %25 = vector.load %arg8[%c0_18, %c0_19] : memref<128x1xbf16, #tpu.memory_space<vmem>>, vector<128x1xbf16>
    %cst_20 = arith.constant dense<0.000000e+00> : vector<8x1xf32>
    %26 = tpu.matmul %24, %25, %cst_20 {dimension_numbers = #tpu.dot_dimension_numbers<[1], [0], [0], [1], [0, 0, 1, 1], [], []>} : vector<8x128xbf16>, vector<128x1xbf16>, vector<8x1xf32> -> vector<8x1xf32>
    %c0_21 = arith.constant 0 : index
    %c0_22 = arith.constant 0 : index
    %27 = vector.load %arg9[%c0_21, %c0_22] : memref<1x1xf32, #tpu.memory_space<vmem>>, vector<1x1xf32>
    %28 = vector.broadcast %27 : vector<1x1xf32> to vector<8x1xf32>
    %29 = arith.addf %26, %28 : vector<8x1xf32>
    %c0_23 = arith.constant 0 : index
    %c0_24 = arith.constant 0 : index
    %30 = vector.load %arg10[%c0_23, %c0_24] : memref<8x1xf32, #tpu.memory_space<vmem>>, vector<8x1xf32>
    tpu.vector_store %arg10[%c0_23, %c0_24], %29 {strides = array<i32>} : memref<8x1xf32, #tpu.memory_space<vmem>>, vector<8x1xf32>,
    return
  }
  func.func @transform_0(%arg0: i32) -> (i32, i32) {
    %c0_i32 = arith.constant 0 : i32
    %c0_i32_0 = arith.constant 0 : i32
    return %arg0, %c0_i32 : i32, i32
  }
  func.func @transform_1(%arg0: i32) -> (i32, i32) {
    %c0_i32 = arith.constant 0 : i32
    %c0_i32_0 = arith.constant 0 : i32
    %c0_i32_1 = arith.constant 0 : i32
    return %c0_i32, %c0_i32_0 : i32, i32
  }
  func.func @transform_2(%arg0: i32) -> (i32, i32) {
    %c0_i32 = arith.constant 0 : i32
    %c0_i32_0 = arith.constant 0 : i32
    %c0_i32_1 = arith.constant 0 : i32
    return %c0_i32, %c0_i32_0 : i32, i32
  }
  func.func @transform_3(%arg0: i32) -> (i32, i32) {
    %c0_i32 = arith.constant 0 : i32
    %c0_i32_0 = arith.constant 0 : i32
    %c0_i32_1 = arith.constant 0 : i32
    return %c0_i32, %c0_i32_0 : i32, i32
  }
  func.func @transform_4(%arg0: i32) -> (i32, i32) {
    %c0_i32 = arith.constant 0 : i32
    %c0_i32_0 = arith.constant 0 : i32
    %c0_i32_1 = arith.constant 0 : i32
    return %c0_i32, %c0_i32_0 : i32, i32
  }
  func.func @transform_5(%arg0: i32) -> (i32, i32) {
    %c0_i32 = arith.constant 0 : i32
    %c0_i32_0 = arith.constant 0 : i32
    %c0_i32_1 = arith.constant 0 : i32
    return %c0_i32, %c0_i32_0 : i32, i32
  }
  func.func @transform_6(%arg0: i32) -> (i32, i32) {
    %c0_i32 = arith.constant 0 : i32
    %c0_i32_0 = arith.constant 0 : i32
    %c0_i32_1 = arith.constant 0 : i32
    return %c0_i32, %c0_i32_0 : i32, i32
  }
  func.func @transform_7(%arg0: i32) -> (i32, i32) {
    %c0_i32 = arith.constant 0 : i32
    %c0_i32_0 = arith.constant 0 : i32
    %c0_i32_1 = arith.constant 0 : i32
    return %c0_i32, %c0_i32_0 : i32, i32
  }
  func.func @transform_8(%arg0: i32) -> (i32, i32) {
    %c0_i32 = arith.constant 0 : i32
    %c0_i32_0 = arith.constant 0 : i32
    %c0_i32_1 = arith.constant 0 : i32
    return %c0_i32, %c0_i32_0 : i32, i32
  }
  func.func @transform_9(%arg0: i32) -> (i32, i32) {
    %c0_i32 = arith.constant 0 : i32
    %c0_i32_0 = arith.constant 0 : i32
    return %arg0, %c0_i32 : i32, i32
  }
}

</mosaic_0001>

<llo_original>
// kernel: pose_encoder_forward.1
$region0: #{pose_encoder_forward.1}
  #allocation0 [shape = 'u32[]', space=smem, size = 0x4, offset = 0x4, fixed_abs, tag = 'smem constant byte address 0x4 - core index']
  #allocation1 [shape = 'u32[72,128]{1,0:T(1,128)}', space=vmem, size = 0x9000, scoped, tag = 'internal scratch']
  #allocation2 [shape = 'f32[1,1]{1,0:T(1,128)S(1)}', space=vmem, size = 0x200, scoped, tag = 'scoped memory for pose_encoder_forward.1']
  %s0 = inlined_call_operand.vmem [shape: bf16[8,128], index: 0, kind: input, shape index: {}]
  %s1 = inlined_call_operand.vmem [shape: bf16[128,128], index: 1, kind: input, shape index: {}]
  %s2 = inlined_call_operand.vmem [shape: f32[1,128], index: 2, kind: input, shape index: {}]
  %s3 = inlined_call_operand.vmem [shape: bf16[128,128], index: 3, kind: input, shape index: {}]
  %s4 = inlined_call_operand.vmem [shape: f32[1,128], index: 4, kind: input, shape index: {}]
  %s5 = inlined_call_operand.vmem [shape: bf16[128,128], index: 5, kind: input, shape index: {}]
  %s6 = inlined_call_operand.vmem [shape: f32[1,128], index: 6, kind: input, shape index: {}]
  %s7 = inlined_call_operand.vmem [shape: bf16[128,1], index: 7, kind: input, shape index: {}]
  %s8 = inlined_call_operand.<no memory space> [shape: f32[1,1], index: 8, kind: input, shape index: {}]
  %s9 = inlined_call_operand.vmem [shape: f32[8,1], index: 9, kind: output, shape index: {}]
  %s10 = sld [smem:[#allocation0]]
  $region46: #{pose_encoder_forward.1} parent=0
    _
  %s12 = ssub.s32 1, %s10
  %s13 = scalar_select 0, %s12, %s10
  %v14 = vstv %s8
  %15 = vst [vmem:[#allocation2] sm:$0x1] %v14
  // Predicated region
  $region2: #{pose_encoder_forward.1} parent=0 // pred_check
    _
  $region3: #{pose_encoder_forward.1} parent=0 // pred_check_branch
    %17 = sbr.rel (0) target = $region5
  $region4: #{pose_encoder_forward.1} parent=0 // pred_region
    _
  $region5: #{pose_encoder_forward.1} parent=0 // pred_fallthru
    _
  // Predicated region
  $region6: #{pose_encoder_forward.1} parent=0 // pred_check
    _
  $region7: #{pose_encoder_forward.1} parent=0 // pred_check_branch
    %19 = sbr.rel (0) target = $region9
  $region8: #{pose_encoder_forward.1} parent=0 // pred_region
    _
  $region9: #{pose_encoder_forward.1} parent=0 // pred_fallthru
    _
  // Predicated region
  $region10: #{pose_encoder_forward.1} parent=0 // pred_check
    _
  $region11: #{pose_encoder_forward.1} parent=0 // pred_check_branch
    %21 = sbr.rel (0) target = $region13
  $region12: #{pose_encoder_forward.1} parent=0 // pred_region
    _
  $region13: #{pose_encoder_forward.1} parent=0 // pred_fallthru
    _
  // Predicated region
  $region14: #{pose_encoder_forward.1} parent=0 // pred_check
    _
  $region15: #{pose_encoder_forward.1} parent=0 // pred_check_branch
    %23 = sbr.rel (0) target = $region17
  $region16: #{pose_encoder_forward.1} parent=0 // pred_region
    _
  $region17: #{pose_encoder_forward.1} parent=0 // pred_fallthru
    _
  // Predicated region
  $region18: #{pose_encoder_forward.1} parent=0 // pred_check
    _
  $region19: #{pose_encoder_forward.1} parent=0 // pred_check_branch
    %25 = sbr.rel (0) target = $region21
  $region20: #{pose_encoder_forward.1} parent=0 // pred_region
    _
  $region21: #{pose_encoder_forward.1} parent=0 // pred_fallthru
    _
  // Predicated region
  $region22: #{pose_encoder_forward.1} parent=0 // pred_check
    _
  $region23: #{pose_encoder_forward.1} parent=0 // pred_check_branch
    %27 = sbr.rel (0) target = $region25
  $region24: #{pose_encoder_forward.1} parent=0 // pred_region
    _
  $region25: #{pose_encoder_forward.1} parent=0 // pred_fallthru
    _
  // Predicated region
  $region26: #{pose_encoder_forward.1} parent=0 // pred_check
    _
  $region27: #{pose_encoder_forward.1} parent=0 // pred_check_branch
    %29 = sbr.rel (0) target = $region29
  $region28: #{pose_encoder_forward.1} parent=0 // pred_region
    _
  $region29: #{pose_encoder_forward.1} parent=0 // pred_fallthru
    _
  // Predicated region
  $region30: #{pose_encoder_forward.1} parent=0 // pred_check
    _
  $region31: #{pose_encoder_forward.1} parent=0 // pred_check_branch
    %31 = sbr.rel (0) target = $region33
  $region32: #{pose_encoder_forward.1} parent=0 // pred_region
    _
  $region33: #{pose_encoder_forward.1} parent=0 // pred_fallthru
    _
  // Predicated region
  $region34: #{pose_encoder_forward.1} parent=0 // pred_check
    _
  $region35: #{pose_encoder_forward.1} parent=0 // pred_check_branch
    %33 = sbr.rel (0) target = $region37
  $region36: #{pose_encoder_forward.1} parent=0 // pred_region
    _
  $region37: #{pose_encoder_forward.1} parent=0 // pred_fallthru
    _
  %v34 = vld [vmem:[%s0] sm:$0xf]
  %v35 = vld [vmem:[%s1] sm:$0xf]
  %v36 = vld [vmem:[%s1 + $0x4] sm:$0xf]
  %v37 = vld [vmem:[%s1 + $0x8] sm:$0xf]
  %v38 = vld [vmem:[%s1 + $0xc] sm:$0xf]
  %v39 = vld [vmem:[%s1 + $0x10] sm:$0xf]
  %v40 = vld [vmem:[%s1 + $0x14] sm:$0xf]
  %v41 = vld [vmem:[%s1 + $0x18] sm:$0xf]
  %v42 = vld [vmem:[%s1 + $0x1c] sm:$0xf]
  %v43 = vld [vmem:[%s1 + $0x20] sm:$0xf]
  %v44 = vld [vmem:[%s1 + $0x24] sm:$0xf]
  %v45 = vld [vmem:[%s1 + $0x28] sm:$0xf]
  %v46 = vld [vmem:[%s1 + $0x2c] sm:$0xf]
  %v47 = vld [vmem:[%s1 + $0x30] sm:$0xf]
  %v48 = vld [vmem:[%s1 + $0x34] sm:$0xf]
  %v49 = vld [vmem:[%s1 + $0x38] sm:$0xf]
  %v50 = vld [vmem:[%s1 + $0x3c] sm:$0xf]
  %v51 = vld [vmem:[%s2] sm:$0x1]
  %v53 = vperm.slane %v51, 0
  %v71 = vunpack.c.l.b16 %v35
  %v72 = vunpack.c.l.b16 %v36
  %v73 = vunpack.c.l.b16 %v37
  %v74 = vunpack.c.l.b16 %v38
  %v75 = vunpack.c.l.b16 %v39
  %v76 = vunpack.c.l.b16 %v40
  %v77 = vunpack.c.l.b16 %v41
  %v78 = vunpack.c.l.b16 %v42
  %v79 = vunpack.c.l.b16 %v43
  %v80 = vunpack.c.l.b16 %v44
  %v81 = vunpack.c.l.b16 %v45
  %v82 = vunpack.c.l.b16 %v46
  %v83 = vunpack.c.l.b16 %v47
  %v84 = vunpack.c.l.b16 %v48
  %v85 = vunpack.c.l.b16 %v49
  %v86 = vunpack.c.l.b16 %v50
  %v87 = vpack.c.b16 %v72, %v71
  %v88 = vpack.c.b16 %v74, %v73
  %v89 = vpack.c.b16 %v76, %v75
  %v90 = vpack.c.b16 %v78, %v77
  %v91 = vpack.c.b16 %v80, %v79
  %v92 = vpack.c.b16 %v82, %v81
  %v93 = vpack.c.b16 %v84, %v83
  %v94 = vpack.c.b16 %v86, %v85
  %103 = vmatpush.bf16.msra.mxu0 %v94
  %104 = vmatpush.bf16.msra.mxu0 %v93
  %105 = vmatpush.bf16.msra.mxu0 %v92
  %106 = vmatpush.bf16.msra.mxu0 %v91
  %107 = vmatpush.bf16.msra.mxu0 %v90
  %108 = vmatpush.bf16.msra.mxu0 %v89
  %109 = vmatpush.bf16.msra.mxu0 %v88
  %110 = vmatpush.bf16.msra.mxu0 %v87
  %111 = vmatmul.bf16.gmra.mxu0 %v34
  %v112 = vpop.f32.mrf.mxu0
  %v113 = vadd.f32 %v53, %v112
  %v114 = vpop.f32.mrf.mxu0
  %115 = vdwg.mxu0
  %v116 = vmax.f32 %v113, 0.0
  %v117 = vpack.c.bf16 %v116, %v116
  %v118 = vld [vmem:[%s3] sm:$0xf]
  %v119 = vld [vmem:[%s3 + $0x4] sm:$0xf]
  %v120 = vld [vmem:[%s3 + $0x8] sm:$0xf]
  %v121 = vld [vmem:[%s3 + $0xc] sm:$0xf]
  %v122 = vld [vmem:[%s3 + $0x10] sm:$0xf]
  %v123 = vld [vmem:[%s3 + $0x14] sm:$0xf]
  %v124 = vld [vmem:[%s3 + $0x18] sm:$0xf]
  %v125 = vld [vmem:[%s3 + $0x1c] sm:$0xf]
  %v126 = vld [vmem:[%s3 + $0x20] sm:$0xf]
  %v127 = vld [vmem:[%s3 + $0x24] sm:$0xf]
  %v128 = vld [vmem:[%s3 + $0x28] sm:$0xf]
  %v129 = vld [vmem:[%s3 + $0x2c] sm:$0xf]
  %v130 = vld [vmem:[%s3 + $0x30] sm:$0xf]
  %v131 = vld [vmem:[%s3 + $0x34] sm:$0xf]
  %v132 = vld [vmem:[%s3 + $0x38] sm:$0xf]
  %v133 = vld [vmem:[%s3 + $0x3c] sm:$0xf]
  %v134 = vld [vmem:[%s4] sm:$0x1]
  %v136 = vperm.slane %v134, 0
  %v154 = vunpack.c.l.b16 %v118
  %v155 = vunpack.c.l.b16 %v119
  %v156 = vunpack.c.l.b16 %v120
  %v157 = vunpack.c.l.b16 %v121
  %v158 = vunpack.c.l.b16 %v122
  %v159 = vunpack.c.l.b16 %v123
  %v160 = vunpack.c.l.b16 %v124
  %v161 = vunpack.c.l.b16 %v125
  %v162 = vunpack.c.l.b16 %v126
  %v163 = vunpack.c.l.b16 %v127
  %v164 = vunpack.c.l.b16 %v128
  %v165 = vunpack.c.l.b16 %v129
  %v166 = vunpack.c.l.b16 %v130
  %v167 = vunpack.c.l.b16 %v131
  %v168 = vunpack.c.l.b16 %v132
  %v169 = vunpack.c.l.b16 %v133
  %v170 = vpack.c.b16 %v155, %v154
  %v171 = vpack.c.b16 %v157, %v156
  %v172 = vpack.c.b16 %v159, %v158
  %v173 = vpack.c.b16 %v161, %v160
  %v174 = vpack.c.b16 %v163, %v162
  %v175 = vpack.c.b16 %v165, %v164
  %v176 = vpack.c.b16 %v167, %v166
  %v177 = vpack.c.b16 %v169, %v168
  %186 = vmatpush.bf16.msra.mxu0 %v177
  %187 = vmatpush.bf16.msra.mxu0 %v176
  %188 = vmatpush.bf16.msra.mxu0 %v175
  %189 = vmatpush.bf16.msra.mxu0 %v174
  %190 = vmatpush.bf16.msra.mxu0 %v173
  %191 = vmatpush.bf16.msra.mxu0 %v172
  %192 = vmatpush.bf16.msra.mxu0 %v171
  %193 = vmatpush.bf16.msra.mxu0 %v170
  %194 = vmatmul.bf16.gmra.mxu0 %v117
  %v195 = vpop.f32.mrf.mxu0
  %v196 = vadd.f32 %v136, %v195
  %v197 = vpop.f32.mrf.mxu0
  %198 = vdwg.mxu0
  %v199 = vmax.f32 %v196, 0.0
  %v200 = vpack.c.bf16 %v199, %v199
  %v201 = vld [vmem:[%s5] sm:$0xf]
  %v202 = vld [vmem:[%s5 + $0x4] sm:$0xf]
  %v203 = vld [vmem:[%s5 + $0x8] sm:$0xf]
  %v204 = vld [vmem:[%s5 + $0xc] sm:$0xf]
  %v205 = vld [vmem:[%s5 + $0x10] sm:$0xf]
  %v206 = vld [vmem:[%s5 + $0x14] sm:$0xf]
  %v207 = vld [vmem:[%s5 + $0x18] sm:$0xf]
  %v208 = vld [vmem:[%s5 + $0x1c] sm:$0xf]
  %v209 = vld [vmem:[%s5 + $0x20] sm:$0xf]
  %v210 = vld [vmem:[%s5 + $0x24] sm:$0xf]
  %v211 = vld [vmem:[%s5 + $0x28] sm:$0xf]
  %v212 = vld [vmem:[%s5 + $0x2c] sm:$0xf]
  %v213 = vld [vmem:[%s5 + $0x30] sm:$0xf]
  %v214 = vld [vmem:[%s5 + $0x34] sm:$0xf]
  %v215 = vld [vmem:[%s5 + $0x38] sm:$0xf]
  %v216 = vld [vmem:[%s5 + $0x3c] sm:$0xf]
  %v217 = vld [vmem:[%s6] sm:$0x1]
  %v219 = vperm.slane %v217, 0
  %v237 = vunpack.c.l.b16 %v201
  %v238 = vunpack.c.l.b16 %v202
  %v239 = vunpack.c.l.b16 %v203
  %v240 = vunpack.c.l.b16 %v204
  %v241 = vunpack.c.l.b16 %v205
  %v242 = vunpack.c.l.b16 %v206
  %v243 = vunpack.c.l.b16 %v207
  %v244 = vunpack.c.l.b16 %v208
  %v245 = vunpack.c.l.b16 %v209
  %v246 = vunpack.c.l.b16 %v210
  %v247 = vunpack.c.l.b16 %v211
  %v248 = vunpack.c.l.b16 %v212
  %v249 = vunpack.c.l.b16 %v213
  %v250 = vunpack.c.l.b16 %v214
  %v251 = vunpack.c.l.b16 %v215
  %v252 = vunpack.c.l.b16 %v216
  %v253 = vpack.c.b16 %v238, %v237
  %v254 = vpack.c.b16 %v240, %v239
  %v255 = vpack.c.b16 %v242, %v241
  %v256 = vpack.c.b16 %v244, %v243
  %v257 = vpack.c.b16 %v246, %v245
  %v258 = vpack.c.b16 %v248, %v247
  %v259 = vpack.c.b16 %v250, %v249
  %v260 = vpack.c.b16 %v252, %v251
  %269 = vmatpush.bf16.msra.mxu0 %v260
  %270 = vmatpush.bf16.msra.mxu0 %v259
  %271 = vmatpush.bf16.msra.mxu0 %v258
  %272 = vmatpush.bf16.msra.mxu0 %v257
  %273 = vmatpush.bf16.msra.mxu0 %v256
  %274 = vmatpush.bf16.msra.mxu0 %v255
  %275 = vmatpush.bf16.msra.mxu0 %v254
  %276 = vmatpush.bf16.msra.mxu0 %v253
  %277 = vmatmul.bf16.gmra.mxu0 %v200
  %v278 = vpop.f32.mrf.mxu0
  %v279 = vadd.f32 %v219, %v278
  %v280 = vpop.f32.mrf.mxu0
  %281 = vdwg.mxu0
  %v282 = vmax.f32 %v279, 0.0
  %v283 = vpack.c.bf16 %v282, %v282
  %v284 = vld [vmem:[%s7] sm:$0xf]
  %v285 = vld [vmem:[%s7 + $0x4] sm:$0xf]
  %v286 = vld [vmem:[%s7 + $0x8] sm:$0xf]
  %v287 = vld [vmem:[%s7 + $0xc] sm:$0xf]
  %v288 = vld [vmem:[%s7 + $0x10] sm:$0xf]
  %v289 = vld [vmem:[%s7 + $0x14] sm:$0xf]
  %v290 = vld [vmem:[%s7 + $0x18] sm:$0xf]
  %v291 = vld [vmem:[%s7 + $0x1c] sm:$0xf]
  %v292 = vld [vmem:[%s7 + $0x20] sm:$0xf]
  %v293 = vld [vmem:[%s7 + $0x24] sm:$0xf]
  %v294 = vld [vmem:[%s7 + $0x28] sm:$0xf]
  %v295 = vld [vmem:[%s7 + $0x2c] sm:$0xf]
  %v296 = vld [vmem:[%s7 + $0x30] sm:$0xf]
  %v297 = vld [vmem:[%s7 + $0x34] sm:$0xf]
  %v298 = vld [vmem:[%s7 + $0x38] sm:$0xf]
  %v299 = vld [vmem:[%s7 + $0x3c] sm:$0xf]
  %v300 = vld [vmem:[#allocation2] sm:$0x1]
  %v302 = vperm.slane %v300, 0
  %v320 = vunpack.c.l.b16 %v284
  %v321 = vunpack.c.l.b16 %v285
  %v322 = vunpack.c.l.b16 %v286
  %v323 = vunpack.c.l.b16 %v287
  %v324 = vunpack.c.l.b16 %v288
  %v325 = vunpack.c.l.b16 %v289
  %v326 = vunpack.c.l.b16 %v290
  %v327 = vunpack.c.l.b16 %v291
  %v328 = vunpack.c.l.b16 %v292
  %v329 = vunpack.c.l.b16 %v293
  %v330 = vunpack.c.l.b16 %v294
  %v331 = vunpack.c.l.b16 %v295
  %v332 = vunpack.c.l.b16 %v296
  %v333 = vunpack.c.l.b16 %v297
  %v334 = vunpack.c.l.b16 %v298
  %v335 = vunpack.c.l.b16 %v299
  %v336 = vpack.c.b16 %v321, %v320
  %v337 = vpack.c.b16 %v323, %v322
  %v338 = vpack.c.b16 %v325, %v324
  %v339 = vpack.c.b16 %v327, %v326
  %v340 = vpack.c.b16 %v329, %v328
  %v341 = vpack.c.b16 %v331, %v330
  %v342 = vpack.c.b16 %v333, %v332
  %v343 = vpack.c.b16 %v335, %v334
  %352 = vmatpush.bf16.msra.mxu0 %v343
  %353 = vmatpush.bf16.msra.mxu0 %v342
  %354 = vmatpush.bf16.msra.mxu0 %v341
  %355 = vmatpush.bf16.msra.mxu0 %v340
  %356 = vmatpush.bf16.msra.mxu0 %v339
  %357 = vmatpush.bf16.msra.mxu0 %v338
  %358 = vmatpush.bf16.msra.mxu0 %v337
  %359 = vmatpush.bf16.msra.mxu0 %v336
  %360 = vmatmul.bf16.gmra.mxu0 %v283
  %v361 = vpop.f32.mrf.mxu0
  %v362 = vadd.f32 %v302, %v361
  %v363 = vpop.f32.mrf.mxu0
  %364 = vdwg.mxu0
  %vm365 = vcmask 7168
  %366 = vst.msk [vmem:[%s9] sm:$0xff] %vm365, %v362
  // Predicated region
  $region38: #{pose_encoder_forward.1} parent=0 // pred_check
    _
  $region39: #{pose_encoder_forward.1} parent=0 // pred_check_branch
    %368 = sbr.rel (0) target = $region41
  $region40: #{pose_encoder_forward.1} parent=0 // pred_region
    _
  $region41: #{pose_encoder_forward.1} parent=0 // pred_fallthru
    _
  // Predicated region
  $region42: #{pose_encoder_forward.1} parent=0 // pred_check
    _
  $region43: #{pose_encoder_forward.1} parent=0 // pred_check_branch
    %370 = sbr.rel (0) target = $region45
  $region44: #{pose_encoder_forward.1} parent=0 // pred_region
    _
  $region45: #{pose_encoder_forward.1} parent=0 // pred_fallthru
    _

</llo_original>
